<compile_context>
chip_gen: v5e
topology: v5e:2x2
jax: 0.10.0
libtpu: 0.0.40
codegen_flags: <defaults>
</compile_context>

<pallas_src>
import functools

import jax
import jax.numpy as jnp
from jax import lax
from jax.experimental import pallas as pl
from jax.experimental.pallas import tpu as pltpu


def _vq_kernel(xp_ref, w1_ref, w2_ref, he2_ref, enc_ref, q_ref, part_ref,
               *, n_valid_rows, needs_mask):
    """One pair-row tile of the VQ lookup.

    xp_ref   : (TP, 2D)    two input vectors packed per 128-lane row
    w1_ref   : (2D, 2K)    blockdiag(e^T, e^T)
    w2_ref   : (2K, 2D)    blockdiag(e, e)
    he2_ref  : (1, 2K)     [0.5*||e||^2 | 0.5*||e||^2]
    enc_ref  : (TP, 2K)    packed one-hot encodings, bf16          (out)
    q_ref    : (TP, 2D)    packed quantized vectors, f32           (out)
    part_ref : (1, 1, 2K)  lanes [0:K]=usage counts, lane K=sq.err (out)
    """
    xp = xp_ref[...]
    tp, d2 = xp.shape
    d = d2 // 2
    k2 = w1_ref.shape[1]
    k = k2 // 2

    # argmin_k ||x - e_k||^2  ==  argmin_k (0.5*||e_k||^2 - x . e_k):
    # ||x||^2 is constant along k; the factor 2 is folded into the half-norm.
    cross = lax.dot_general(xp, w1_ref[...], (((1,), (0,)), ((), ())),
                            preferred_element_type=jnp.float32)     # (TP, 2K)
    score = he2_ref[...] - cross

    # Per-half argmin with first-occurrence tie break (matches torch.argmin).
    iota_k = lax.broadcasted_iota(jnp.int32, (tp, k), 1)
    s0 = score[:, :k]                        # lane-boundary slices (K = 128)
    s1 = score[:, k:]
    idx0 = jnp.min(jnp.where(s0 == jnp.min(s0, axis=1, keepdims=True),
                             iota_k, k), axis=1, keepdims=True)
    idx1 = jnp.min(jnp.where(s1 == jnp.min(s1, axis=1, keepdims=True),
                             iota_k, k), axis=1, keepdims=True)
    oh0 = (iota_k == idx0).astype(jnp.float32)                       # (TP, K)
    oh1 = (iota_k == idx1).astype(jnp.float32)
    oh_pair = jnp.concatenate([oh0, oh1], axis=1)                    # (TP, 2K)

    # quantized = one-hot @ blockdiag(e, e): exact row copy of the codebook.
    quant = lax.dot_general(oh_pair, w2_ref[...], (((1,), (0,)), ((), ())),
                            preferred_element_type=jnp.float32)      # (TP, 2D)

    # Narrow only the store: 0.0 / 1.0 are exactly representable in bf16.
    enc_ref[...] = oh_pair.astype(enc_ref.dtype)
    # Straight-through estimator: x + (quant - x).detach() == quant forward.
    q_ref[...] = quant.astype(q_ref.dtype)

    # Per-tile partial reductions (finished in the wrapper; no cross-step
    # scratch -> grid axis stays "parallel"/megacore-shardable).
    diff = quant - xp
    if needs_mask:
        row = (pl.program_id(0) * tp
               + lax.broadcasted_iota(jnp.int32, (tp, 1), 0))
        valid0 = (2 * row < n_valid_rows).astype(jnp.float32)        # (TP, 1)
        valid1 = (2 * row + 1 < n_valid_rows).astype(jnp.float32)
        lane = lax.broadcasted_iota(jnp.int32, (tp, d2), 1)
        dmask = jnp.where(lane < d, valid0, valid1)                  # (TP, 2D)
        sqerr = jnp.sum(diff * diff * dmask)
        counts = jnp.sum(oh0 * valid0 + oh1 * valid1,
                         axis=0, keepdims=True)                      # (1, K)
    else:
        sqerr = jnp.sum(diff * diff)
        counts = jnp.sum(oh0 + oh1, axis=0, keepdims=True)

    lane_k = lax.broadcasted_iota(jnp.int32, (1, k), 1)
    sq_row = jnp.where(lane_k == 0, sqerr, jnp.float32(0.0))         # (1, K)
    part_ref[...] = jnp.concatenate([counts, sq_row],
                                    axis=1).reshape(1, 1, k2)


def _choose_pair_tile(np_rows, requested):
    """Pair-row tile: multiple of 16, <= requested, and small enough that the
    parallel grid axis gets >= 2 steps whenever two tiles fit (v7x megacore).
    """
    half = -(-np_rows // 2)                        # cdiv(np_rows, 2)
    cap = max(16, ((half + 15) // 16) * 16)
    t = max(16, min(int(requested), cap))
    return (t // 16) * 16


@functools.partial(jax.jit, static_argnames=("tp",))
def vector_quantizer_forward(x_nchw, embedding, commitment_cost, *, tp=2048):
    """x_nchw: (B, D, H, W) float32; embedding: (K, D) float32.

    Returns (loss, quantized (B,D,H,W) f32, perplexity, encodings (N,K) bf16).
    """
    B, D, H, W = x_nchw.shape
    K, D_e = embedding.shape
    assert D == D_e

    # NCHW -> NHWC -> (N, D), pad to a full pair-tile multiple, then pack two
    # rows per 128-lane row: (NP_pad, 2D) — a free row-major view reshape.
    x_nhwc = jnp.transpose(x_nchw, (0, 2, 3, 1))
    flat = x_nhwc.reshape(-1, D).astype(jnp.float32)
    N = flat.shape[0]

    NP = -(-N // 2)
    tile = _choose_pair_tile(NP, tp)
    n_tiles = -(-NP // tile)
    NP_pad = n_tiles * tile
    N_pad = 2 * NP_pad
    if N_pad > N:
        flat = jnp.pad(flat, ((0, N_pad - N), (0, 0)))
    flat_pair = flat.reshape(NP_pad, 2 * D)

    # Grid-invariant codebook tensors, hoisted out of the kernel.
    e32 = embedding.astype(jnp.float32)
    eT = e32.T
    zDK = jnp.zeros((D, K), jnp.float32)
    zKD = jnp.zeros((K, D), jnp.float32)
    w1 = jnp.concatenate(
        [jnp.concatenate([eT, zDK], axis=1),
         jnp.concatenate([zDK, eT], axis=1)], axis=0)         # (2D, 2K)
    w2 = jnp.concatenate(
        [jnp.concatenate([e32, zKD], axis=1),
         jnp.concatenate([zKD, e32], axis=1)], axis=0)        # (2K, 2D)
    he2 = 0.5 * jnp.sum(e32 * e32, axis=1).reshape(1, K)
    he2_pair = jnp.concatenate([he2, he2], axis=1)            # (1, 2K)

    kernel = functools.partial(_vq_kernel, n_valid_rows=N,
                               needs_mask=(N_pad != N))

    enc_pair, q_pair, partial = pl.pallas_call(
        kernel,
        out_shape=(
            jax.ShapeDtypeStruct((NP_pad, 2 * K), jnp.bfloat16),   # one-hot
            jax.ShapeDtypeStruct((NP_pad, 2 * D), jnp.float32),    # quantized
            jax.ShapeDtypeStruct((n_tiles, 1, 2 * K), jnp.float32),  # partials
        ),
        grid_spec=pltpu.PrefetchScalarGridSpec(
            num_scalar_prefetch=0,
            grid=(n_tiles,),
            in_specs=[
                pl.BlockSpec((tile, 2 * D), lambda i: (i, 0)),   # packed input
                pl.BlockSpec((2 * D, 2 * K), lambda i: (0, 0)),  # blockdiag e^T
                pl.BlockSpec((2 * K, 2 * D), lambda i: (0, 0)),  # blockdiag e
                pl.BlockSpec((1, 2 * K), lambda i: (0, 0)),      # half-norms
            ],
            out_specs=[
                pl.BlockSpec((tile, 2 * K), lambda i: (i, 0)),
                pl.BlockSpec((tile, 2 * D), lambda i: (i, 0)),
                pl.BlockSpec((1, 1, 2 * K), lambda i: (i, 0, 0)),
            ],
        ),
        compiler_params=pltpu.CompilerParams(
            dimension_semantics=("parallel",)),
    )(flat_pair, w1, w2, he2_pair)

    # Tiny finalization reductions outside the kernel (keeps the Pallas grid
    # axis megacore-parallel).
    counts = jnp.sum(partial[:, 0, :K], axis=0)               # (K,)
    sqerr = jnp.sum(partial[:, 0, K])
    n_total = jnp.float32(N)
    mse = sqerr / (n_total * jnp.float32(D))
    # e_latent_loss == q_latent_loss numerically in the forward pass.
    loss = (1.0 + commitment_cost) * mse
    avg_probs = counts / n_total
    perplexity = jnp.exp(-jnp.sum(avg_probs * jnp.log(avg_probs + 1e-10)))

    encodings = enc_pair.reshape(N_pad, K)[:N]                # bf16, exact 0/1
    quant_flat = q_pair.reshape(N_pad, D)[:N]
    quantized = jnp.transpose(quant_flat.reshape(B, H, W, D), (0, 3, 1, 2))
    return loss, quantized, perplexity, encodings


def _reference(x_nchw, embedding, commitment_cost):
    x = jnp.transpose(x_nchw, (0, 2, 3, 1))
    shape = x.shape
    flat = x.reshape(-1, embedding.shape[1])
    dist = (jnp.sum(flat ** 2, axis=1, keepdims=True)
            + jnp.sum(embedding ** 2, axis=1)
            - 2.0 * flat @ embedding.T)
    idx = jnp.argmin(dist, axis=1)
    enc = jax.nn.one_hot(idx, embedding.shape[0], dtype=jnp.float32)
    quant = (enc @ embedding).reshape(shape)
    mse = jnp.mean((quant - x) ** 2)
    loss = (1.0 + commitment_cost) * mse
    avg = jnp.mean(enc, axis=0)
    perp = jnp.exp(-jnp.sum(avg * jnp.log(avg + 1e-10)))
    return loss, jnp.transpose(quant, (0, 3, 1, 2)), perp, enc


if __name__ == "__main__":
    num_embeddings = 128
    embedding_dim = 64
    commitment_cost = 0.25

    key = jax.random.PRNGKey(0)
    k_x, k_e, k_x2 = jax.random.split(key, 3)
    # nn.Embedding weight initialized uniform(-1/K, 1/K), shape (K, D)
    embedding = jax.random.uniform(
        k_e, (num_embeddings, embedding_dim), dtype=jnp.float32,
        minval=-1.0 / num_embeddings, maxval=1.0 / num_embeddings)

    # Case 1: B*H*W = 128 (no padding / no masking path).
    x1 = jax.random.normal(k_x, (2, embedding_dim, 8, 8), dtype=jnp.float32)
    # Case 2: B*H*W = 3*5*7 = 105 (odd -> pad + per-row mask path).
    x2 = jax.random.normal(k_x2, (3, embedding_dim, 5, 7), dtype=jnp.float32)

    for x in (x1, x2):
        loss, quantized, perplexity, encodings = jax.block_until_ready(
            vector_quantizer_forward(x, embedding, commitment_cost))

        loss_r, quant_r, perp_r, enc_r = _reference(x, embedding,
                                                    commitment_cost)
        assert jnp.allclose(loss, loss_r, atol=1e-5), (loss, loss_r)
        assert jnp.allclose(quantized, quant_r, atol=1e-5)
        assert jnp.allclose(perplexity, perp_r, atol=1e-4), (perplexity, perp_r)
        assert jnp.allclose(encodings.astype(jnp.float32), enc_r)

    print("KERNEL_OK")
</pallas_src>

<mosaic_0001>
module attributes {stable_mosaic.version = 11 : i64} {
  func.func @_vq_kernel(%arg0: i32, %arg1: memref<32x128xf32, #tpu.memory_space<vmem>>, %arg2: memref<128x256xf32, #tpu.memory_space<vmem>>, %arg3: memref<256x128xf32, #tpu.memory_space<vmem>>, %arg4: memref<1x256xf32, #tpu.memory_space<vmem>>, %arg5: memref<32x256xbf16, #tpu.memory_space<vmem>>, %arg6: memref<32x128xf32, #tpu.memory_space<vmem>>, %arg7: memref<1x1x256xf32, #tpu.memory_space<vmem>>) attributes {dimension_semantics = [#tpu.dimension_semantics<parallel>], iteration_bounds = array<i64: 2>, scalar_prefetch = 0 : i64, scratch_operands = 0 : i64, tpu.core_type = #tpu.core_type<tc>, window_params = [{transform_indices = @transform_0, window_bounds = array<i64: 32, 128>}, {pipeline_mode = #tpu.pipeline_mode<synchronous>, transform_indices = @transform_1, window_bounds = array<i64: 128, 256>}, {pipeline_mode = #tpu.pipeline_mode<synchronous>, transform_indices = @transform_2, window_bounds = array<i64: 256, 128>}, {pipeline_mode = #tpu.pipeline_mode<synchronous>, transform_indices = @transform_3, window_bounds = array<i64: 1, 256>}, {transform_indices = @transform_4, window_bounds = array<i64: 32, 256>}, {transform_indices = @transform_5, window_bounds = array<i64: 32, 128>}, {transform_indices = @transform_6, window_bounds = array<i64: 1, 1, 256>}]} {
    %c0 = arith.constant 0 : index
    %c0_0 = arith.constant 0 : index
    %0 = vector.load %arg1[%c0, %c0_0] : memref<32x128xf32, #tpu.memory_space<vmem>>, vector<32x128xf32>
    %c0_1 = arith.constant 0 : index
    %c0_2 = arith.constant 0 : index
    %1 = vector.load %arg2[%c0_1, %c0_2] : memref<128x256xf32, #tpu.memory_space<vmem>>, vector<128x256xf32>
    %cst = arith.constant dense<0.000000e+00> : vector<32x256xf32>
    %2 = tpu.matmul %0, %1, %cst {dimension_numbers = #tpu.dot_dimension_numbers<[1], [0], [0], [1], [0, 0, 1, 1], [], []>} : vector<32x128xf32>, vector<128x256xf32>, vector<32x256xf32> -> vector<32x256xf32>
    %c0_3 = arith.constant 0 : index
    %c0_4 = arith.constant 0 : index
    %3 = vector.load %arg4[%c0_3, %c0_4] : memref<1x256xf32, #tpu.memory_space<vmem>>, vector<1x256xf32>
    %4 = vector.broadcast %3 : vector<1x256xf32> to vector<32x256xf32>
    %5 = arith.subf %4, %2 : vector<32x256xf32>
    %6 = tpu.iota {dimensions = array<i32: 1>} : vector<32x128xi32>
    %7 = vector.extract_strided_slice %5 {offsets = [0, 0], sizes = [32, 128], strides = [1, 1]} : vector<32x256xf32> to vector<32x128xf32>
    %8 = vector.extract_strided_slice %5 {offsets = [0, 128], sizes = [32, 128], strides = [1, 1]} : vector<32x256xf32> to vector<32x128xf32>
    %cst_5 = arith.constant dense<0x7F800000> : vector<32xf32>
    %9 = vector.multi_reduction <minimumf>, %7, %cst_5 [1] : vector<32x128xf32> to vector<32xf32>
    %10 = vector.shape_cast %9 : vector<32xf32> to vector<32x1xf32>
    %11 = vector.broadcast %10 : vector<32x1xf32> to vector<32x128xf32>
    %12 = arith.cmpf oeq, %7, %11 : vector<32x128xf32>
    %c128_i32 = arith.constant 128 : i32
    %13 = vector.broadcast %c128_i32 : i32 to vector<32x128xi32>
    %14 = arith.select %12, %6, %13 : vector<32x128xi1>, vector<32x128xi32>
    %cst_6 = arith.constant dense<2147483647> : vector<32xi32>
    %15 = vector.multi_reduction <minsi>, %14, %cst_6 [1] : vector<32x128xi32> to vector<32xi32>
    %16 = vector.shape_cast %15 : vector<32xi32> to vector<32x1xi32>
    %cst_7 = arith.constant dense<0x7F800000> : vector<32xf32>
    %17 = vector.multi_reduction <minimumf>, %8, %cst_7 [1] : vector<32x128xf32> to vector<32xf32>
    %18 = vector.shape_cast %17 : vector<32xf32> to vector<32x1xf32>
    %19 = vector.broadcast %18 : vector<32x1xf32> to vector<32x128xf32>
    %20 = arith.cmpf oeq, %8, %19 : vector<32x128xf32>
    %c128_i32_8 = arith.constant 128 : i32
    %21 = vector.broadcast %c128_i32_8 : i32 to vector<32x128xi32>
    %22 = arith.select %20, %6, %21 : vector<32x128xi1>, vector<32x128xi32>
    %cst_9 = arith.constant dense<2147483647> : vector<32xi32>
    %23 = vector.multi_reduction <minsi>, %22, %cst_9 [1] : vector<32x128xi32> to vector<32xi32>
    %24 = vector.shape_cast %23 : vector<32xi32> to vector<32x1xi32>
    %25 = vector.broadcast %16 : vector<32x1xi32> to vector<32x128xi32>
    %26 = arith.cmpi eq, %6, %25 : vector<32x128xi32>
    %27 = arith.extui %26 : vector<32x128xi1> to vector<32x128xi32>
    %28 = arith.sitofp %27 : vector<32x128xi32> to vector<32x128xf32>
    %29 = vector.broadcast %24 : vector<32x1xi32> to vector<32x128xi32>
    %30 = arith.cmpi eq, %6, %29 : vector<32x128xi32>
    %31 = arith.extui %30 : vector<32x128xi1> to vector<32x128xi32>
    %32 = arith.sitofp %31 : vector<32x128xi32> to vector<32x128xf32>
    %33 = tpu.concatenate %28, %32 in 1 : vector<32x128xf32>, vector<32x128xf32> -> vector<32x256xf32>
    %c0_10 = arith.constant 0 : index
    %c0_11 = arith.constant 0 : index
    %34 = vector.load %arg3[%c0_10, %c0_11] : memref<256x128xf32, #tpu.memory_space<vmem>>, vector<256x128xf32>
    %cst_12 = arith.constant dense<0.000000e+00> : vector<32x128xf32>
    %35 = tpu.matmul %33, %34, %cst_12 {dimension_numbers = #tpu.dot_dimension_numbers<[1], [0], [0], [1], [0, 0, 1, 1], [], []>} : vector<32x256xf32>, vector<256x128xf32>, vector<32x128xf32> -> vector<32x128xf32>
    %36 = arith.truncf %33 : vector<32x256xf32> to vector<32x256xbf16>
    %c0_13 = arith.constant 0 : index
    %c0_14 = arith.constant 0 : index
    %37 = vector.load %arg5[%c0_13, %c0_14] : memref<32x256xbf16, #tpu.memory_space<vmem>>, vector<32x256xbf16>
    tpu.vector_store %arg5[%c0_13, %c0_14], %36 {strides = array<i32>} : memref<32x256xbf16, #tpu.memory_space<vmem>>, vector<32x256xbf16>,
    %c0_15 = arith.constant 0 : index
    %c0_16 = arith.constant 0 : index
    %38 = vector.load %arg6[%c0_15, %c0_16] : memref<32x128xf32, #tpu.memory_space<vmem>>, vector<32x128xf32>
    tpu.vector_store %arg6[%c0_15, %c0_16], %35 {strides = array<i32>} : memref<32x128xf32, #tpu.memory_space<vmem>>, vector<32x128xf32>,
    %39 = arith.subf %35, %0 : vector<32x128xf32>
    %40 = arith.mulf %39, %39 : vector<32x128xf32>
    %41 = vector.shape_cast %40 : vector<32x128xf32> to vector<1x32x128xf32>
    %cst_17 = arith.constant dense<0.000000e+00> : vector<1xf32>
    %42 = vector.multi_reduction <add>, %41, %cst_17 [1, 2] : vector<1x32x128xf32> to vector<1xf32>
    %43 = vector.shape_cast %42 : vector<1xf32> to vector<1x1x1xf32>
    %44 = vector.extract %43[0, 0, 0] : f32 from vector<1x1x1xf32>
    %45 = arith.addf %28, %32 : vector<32x128xf32>
    %cst_18 = arith.constant dense<0.000000e+00> : vector<128xf32>
    %46 = vector.multi_reduction <add>, %45, %cst_18 [0] : vector<32x128xf32> to vector<128xf32>
    %47 = vector.shape_cast %46 : vector<128xf32> to vector<1x128xf32>
    %48 = tpu.iota {dimensions = array<i32: 1>} : vector<1x128xi32>
    %c0_i32 = arith.constant 0 : i32
    %49 = vector.broadcast %c0_i32 : i32 to vector<1x128xi32>
    %50 = arith.cmpi eq, %48, %49 : vector<1x128xi32>
    %cst_19 = arith.constant 0.000000e+00 : f32
    %51 = vector.broadcast %44 : f32 to vector<1x128xf32>
    %52 = vector.broadcast %cst_19 : f32 to vector<1x128xf32>
    %53 = arith.select %50, %51, %52 : vector<1x128xi1>, vector<1x128xf32>
    %54 = tpu.concatenate %47, %53 in 1 : vector<1x128xf32>, vector<1x128xf32> -> vector<1x256xf32>
    %55 = vector.shape_cast %54 : vector<1x256xf32> to vector<1x1x256xf32>
    %c0_20 = arith.constant 0 : index
    %c0_21 = arith.constant 0 : index
    %c0_22 = arith.constant 0 : index
    %56 = vector.load %arg7[%c0_20, %c0_21, %c0_22] : memref<1x1x256xf32, #tpu.memory_space<vmem>>, vector<1x1x256xf32>
    tpu.vector_store %arg7[%c0_20, %c0_21, %c0_22], %55 {strides = array<i32>} : memref<1x1x256xf32, #tpu.memory_space<vmem>>, vector<1x1x256xf32>,
    return
  }
  func.func @transform_0(%arg0: i32) -> (i32, i32) {
    %c0_i32 = arith.constant 0 : i32
    %c0_i32_0 = arith.constant 0 : i32
    return %arg0, %c0_i32 : i32, i32
  }
  func.func @transform_1(%arg0: i32) -> (i32, i32) {
    %c0_i32 = arith.constant 0 : i32
    %c0_i32_0 = arith.constant 0 : i32
    %c0_i32_1 = arith.constant 0 : i32
    return %c0_i32, %c0_i32_0 : i32, i32
  }
  func.func @transform_2(%arg0: i32) -> (i32, i32) {
    %c0_i32 = arith.constant 0 : i32
    %c0_i32_0 = arith.constant 0 : i32
    %c0_i32_1 = arith.constant 0 : i32
    return %c0_i32, %c0_i32_0 : i32, i32
  }
  func.func @transform_3(%arg0: i32) -> (i32, i32) {
    %c0_i32 = arith.constant 0 : i32
    %c0_i32_0 = arith.constant 0 : i32
    %c0_i32_1 = arith.constant 0 : i32
    return %c0_i32, %c0_i32_0 : i32, i32
  }
  func.func @transform_4(%arg0: i32) -> (i32, i32) {
    %c0_i32 = arith.constant 0 : i32
    %c0_i32_0 = arith.constant 0 : i32
    return %arg0, %c0_i32 : i32, i32
  }
  func.func @transform_5(%arg0: i32) -> (i32, i32) {
    %c0_i32 = arith.constant 0 : i32
    %c0_i32_0 = arith.constant 0 : i32
    return %arg0, %c0_i32 : i32, i32
  }
  func.func @transform_6(%arg0: i32) -> (i32, i32, i32) {
    %c0_i32 = arith.constant 0 : i32
    %c0_i32_0 = arith.constant 0 : i32
    %c0_i32_1 = arith.constant 0 : i32
    return %arg0, %c0_i32, %c0_i32_0 : i32, i32, i32
  }
}

</mosaic_0001>

<llo_original>
// kernel: vector_quantizer_forward.1
$region0: #{vector_quantizer_forward.1}
  #allocation0 [shape = 'u32[]', space=smem, size = 0x4, offset = 0x4, fixed_abs, tag = 'smem constant byte address 0x4 - core index']
  #allocation1 [shape = 'u32[72,128]{1,0:T(1,128)}', space=vmem, size = 0x9000, scoped, tag = 'internal scratch']
  %s0 = inlined_call_operand.vmem [shape: f32[64,128], index: 0, kind: input, shape index: {}]
  %s1 = inlined_call_operand.vmem [shape: f32[128,256], index: 1, kind: input, shape index: {}]
  %s2 = inlined_call_operand.vmem [shape: f32[256,128], index: 2, kind: input, shape index: {}]
  %s3 = inlined_call_operand.vmem [shape: f32[1,256], index: 3, kind: input, shape index: {}]
  %s4 = inlined_call_operand.vmem [shape: bf16[64,256], index: 4, kind: output, shape index: {0}]
  %s5 = inlined_call_operand.vmem [shape: f32[64,128], index: 5, kind: output, shape index: {1}]
  %s6 = inlined_call_operand.vmem [shape: f32[2,1,256], index: 6, kind: output, shape index: {2}]
  %7 = xla_tuple %s4, %s5, %s6
  %s8 = sld [smem:[#allocation0]]
  $region65: #{vector_quantizer_forward.1} parent=0
    _
  %s10 = ssub.s32 1, %s8
  %s11 = scalar_select 0, %s10, %s8
  loop: start=0, step=1, limit=4
  $region2: #{vector_quantizer_forward.1} parent=0 // loop_pre_header
    _
  $region3: #{vector_quantizer_forward.1} parent=0 // loop_header
    %s13 = sphi 0, %s17
    %p14 = scmp.ge.s32.totalorder %s13, 4
    %s23 = sphi 0, %s25
    %s26 = sphi 0, %s23
    %s27 = sphi 0, %s26
    %s43 = sphi 0, %s27
    %s47 = sphi 0, %s47
    %s49 = sphi 0, %s47
    %s50 = sphi 0, %s49
    %s64 = sphi 0, %s50
    %s68 = sphi 0, %s68
    %s70 = sphi 0, %s68
    %s71 = sphi 0, %s70
    %s85 = sphi 0, %s71
    %s89 = sphi 0, %s89
    %s91 = sphi 0, %s89
    %s92 = sphi 0, %s91
    %s106 = sphi 0, %s92
    %s112 = sphi 0, %s114
    %s115 = sphi 0, %s112
    %s116 = sphi 0, %s115
    %s132 = sphi 0, %s116
    %s138 = sphi 0, %s140
    %s141 = sphi 0, %s138
    %s142 = sphi 0, %s141
    %s158 = sphi 0, %s142
    %s164 = sphi 0, %s166
    %s167 = sphi 0, %s164
    %s168 = sphi 0, %s167
    %s184 = sphi 0, %s168
  $region4: #{vector_quantizer_forward.1} parent=0 // loop_header_branch
    %16 = sbr.rel (%p14) target = $region8
  $region5: #{vector_quantizer_forward.1} parent=0 // loop_body
    %s18 = ssub.s32 %s13, 1
    %s19 = ssub.s32 %s13, 2
    %s20 = sadd.s32 %s13, 1
    %s21 = ssub.s32 %s13, %s20
    %p22 = scmp.eq.s32.totalorder %s21, 0
    %s24 = sadd.s32 %s23, 1
    %s25 = scalar_select %p22, %s23, %s24
    %p28 = pneg %p22
    %p29 = scmp.eq.s32.totalorder %s13, 1
    %p30 = por %p28, %p29
    %p31 = scmp.ne.s32.totalorder %s23, %s26
    %p32 = scmp.eq.s32.totalorder %s13, 0
    %p33 = por %p31, %p32
    %p34 = scmp.ne.s32.totalorder %s23, %s26
    %p35 = scmp.eq.s32.totalorder %s18, 1
    %p36 = por %p34, %p35
    %p37 = scmp.ne.s32.totalorder %s26, %s27
    %p38 = scmp.eq.s32.totalorder %s18, 0
    %p39 = por %p37, %p38
    %p40 = scmp.ne.s32.totalorder %s26, %s27
    %p41 = scmp.eq.s32.totalorder %s19, 1
    %p42 = por %p40, %p41
    %p44 = scmp.ne.s32.totalorder %s27, %s43
    %p45 = scmp.eq.s32.totalorder %s19, 0
    %p46 = por %p44, %p45
    %s48 = sadd.s32 %s47, 1
    %p51 = scmp.eq.s32.totalorder %s13, 1
    %p52 = scmp.ne.s32.totalorder %s47, %s49
    %p53 = scmp.eq.s32.totalorder %s13, 0
    %p54 = por %p52, %p53
    %p55 = scmp.ne.s32.totalorder %s47, %s49
    %p56 = scmp.eq.s32.totalorder %s18, 1
    %p57 = por %p55, %p56
    %p58 = scmp.ne.s32.totalorder %s49, %s50
    %p59 = scmp.eq.s32.totalorder %s18, 0
    %p60 = por %p58, %p59
    %p61 = scmp.ne.s32.totalorder %s49, %s50
    %p62 = scmp.eq.s32.totalorder %s19, 1
    %p63 = por %p61, %p62
    %p65 = scmp.ne.s32.totalorder %s50, %s64
    %p66 = scmp.eq.s32.totalorder %s19, 0
    %p67 = por %p65, %p66
    %s69 = sadd.s32 %s68, 1
    %p72 = scmp.eq.s32.totalorder %s13, 1
    %p73 = scmp.ne.s32.totalorder %s68, %s70
    %p74 = scmp.eq.s32.totalorder %s13, 0
    %p75 = por %p73, %p74
    %p76 = scmp.ne.s32.totalorder %s68, %s70
    %p77 = scmp.eq.s32.totalorder %s18, 1
    %p78 = por %p76, %p77
    %p79 = scmp.ne.s32.totalorder %s70, %s71
    %p80 = scmp.eq.s32.totalorder %s18, 0
    %p81 = por %p79, %p80
    %p82 = scmp.ne.s32.totalorder %s70, %s71
    %p83 = scmp.eq.s32.totalorder %s19, 1
    %p84 = por %p82, %p83
    %p86 = scmp.ne.s32.totalorder %s71, %s85
    %p87 = scmp.eq.s32.totalorder %s19, 0
    %p88 = por %p86, %p87
    %s90 = sadd.s32 %s89, 1
    %p93 = scmp.eq.s32.totalorder %s13, 1
    %p94 = scmp.ne.s32.totalorder %s89, %s91
    %p95 = scmp.eq.s32.totalorder %s13, 0
    %p96 = por %p94, %p95
    %p97 = scmp.ne.s32.totalorder %s89, %s91
    %p98 = scmp.eq.s32.totalorder %s18, 1
    %p99 = por %p97, %p98
    %p100 = scmp.ne.s32.totalorder %s91, %s92
    %p101 = scmp.eq.s32.totalorder %s18, 0
    %p102 = por %p100, %p101
    %p103 = scmp.ne.s32.totalorder %s91, %s92
    %p104 = scmp.eq.s32.totalorder %s19, 1
    %p105 = por %p103, %p104
    %p107 = scmp.ne.s32.totalorder %s92, %s106
    %p108 = scmp.eq.s32.totalorder %s19, 0
    %p109 = por %p107, %p108
    %s110 = ssub.s32 %s13, %s20
    %p111 = scmp.eq.s32.totalorder %s110, 0
    %s113 = sadd.s32 %s112, 1
    %s114 = scalar_select %p111, %s112, %s113
    %p117 = pneg %p111
    %p118 = scmp.eq.s32.totalorder %s13, 1
    %p119 = por %p117, %p118
    %p120 = scmp.ne.s32.totalorder %s112, %s115
    %p121 = scmp.eq.s32.totalorder %s13, 0
    %p122 = por %p120, %p121
    %p123 = scmp.ne.s32.totalorder %s112, %s115
    %p124 = scmp.eq.s32.totalorder %s18, 1
    %p125 = por %p123, %p124
    %p126 = scmp.ne.s32.totalorder %s115, %s116
    %p127 = scmp.eq.s32.totalorder %s18, 0
    %p128 = por %p126, %p127
    %p129 = scmp.ne.s32.totalorder %s115, %s116
    %p130 = scmp.eq.s32.totalorder %s19, 1
    %p131 = por %p129, %p130
    %p133 = scmp.ne.s32.totalorder %s116, %s132
    %p134 = scmp.eq.s32.totalorder %s19, 0
    %p135 = por %p133, %p134
    %s136 = ssub.s32 %s13, %s20
    %p137 = scmp.eq.s32.totalorder %s136, 0
    %s139 = sadd.s32 %s138, 1
    %s140 = scalar_select %p137, %s138, %s139
    %p143 = pneg %p137
    %p144 = scmp.eq.s32.totalorder %s13, 1
    %p145 = por %p143, %p144
    %p146 = scmp.ne.s32.totalorder %s138, %s141
    %p147 = scmp.eq.s32.totalorder %s13, 0
    %p148 = por %p146, %p147
    %p149 = scmp.ne.s32.totalorder %s138, %s141
    %p150 = scmp.eq.s32.totalorder %s18, 1
    %p151 = por %p149, %p150
    %p152 = scmp.ne.s32.totalorder %s141, %s142
    %p153 = scmp.eq.s32.totalorder %s18, 0
    %p154 = por %p152, %p153
    %p155 = scmp.ne.s32.totalorder %s141, %s142
    %p156 = scmp.eq.s32.totalorder %s19, 1
    %p157 = por %p155, %p156
    %p159 = scmp.ne.s32.totalorder %s142, %s158
    %p160 = scmp.eq.s32.totalorder %s19, 0
    %p161 = por %p159, %p160
    %s162 = ssub.s32 %s13, %s20
    %p163 = scmp.eq.s32.totalorder %s162, 0
    %s165 = sadd.s32 %s164, 1
    %s166 = scalar_select %p163, %s164, %s165
    %p169 = pneg %p163
    %p170 = scmp.eq.s32.totalorder %s13, 1
    %p171 = por %p169, %p170
    %p172 = scmp.ne.s32.totalorder %s164, %s167
    %p173 = scmp.eq.s32.totalorder %s13, 0
    %p174 = por %p172, %p173
    %p175 = scmp.ne.s32.totalorder %s164, %s167
    %p176 = scmp.eq.s32.totalorder %s18, 1
    %p177 = por %p175, %p176
    %p178 = scmp.ne.s32.totalorder %s167, %s168
    %p179 = scmp.eq.s32.totalorder %s18, 0
    %p180 = por %p178, %p179
    %p181 = scmp.ne.s32.totalorder %s167, %s168
    %p182 = scmp.eq.s32.totalorder %s19, 1
    %p183 = por %p181, %p182
    %p185 = scmp.ne.s32.totalorder %s168, %s184
    %p186 = scmp.eq.s32.totalorder %s19, 0
    %p187 = por %p185, %p186
    %p188 = scmp.le.s32.totalorder 1, %s13
    %p189 = scmp.lt.s32.totalorder %s13, 3
    %p190 = pnand %p188, %p189
    %p191 = pneg %p190
    // Predicated region
    $region9: #{vector_quantizer_forward.1} parent=5 // pred_check
      _
    $region10: #{vector_quantizer_forward.1} parent=5 // pred_check_branch
      %193 = sbr.rel (%p190) target = $region12
    $region11: #{vector_quantizer_forward.1} parent=5 // pred_region
      %s194 = ssub.s32 %s13, 1
      // Predicated region
      $region13: #{vector_quantizer_forward.1} parent=11 // pred_check
        %p195 = pneg %p60
      $region14: #{vector_quantizer_forward.1} parent=11 // pred_check_branch
        %197 = sbr.rel (%p195) target = $region16
      $region15: #{vector_quantizer_forward.1} parent=11 // pred_region
        _
      $region16: #{vector_quantizer_forward.1} parent=11 // pred_fallthru
        _
      // Predicated region
      $region17: #{vector_quantizer_forward.1} parent=11 // pred_check
        %p198 = pneg %p81
      $region18: #{vector_quantizer_forward.1} parent=11 // pred_check_branch
        %200 = sbr.rel (%p198) target = $region20
      $region19: #{vector_quantizer_forward.1} parent=11 // pred_region
        _
      $region20: #{vector_quantizer_forward.1} parent=11 // pred_fallthru
        _
      // Predicated region
      $region21: #{vector_quantizer_forward.1} parent=11 // pred_check
        %p201 = pneg %p102
      $region22: #{vector_quantizer_forward.1} parent=11 // pred_check_branch
        %203 = sbr.rel (%p201) target = $region24
      $region23: #{vector_quantizer_forward.1} parent=11 // pred_region
        _
      $region24: #{vector_quantizer_forward.1} parent=11 // pred_fallthru
        _
    $region12: #{vector_quantizer_forward.1} parent=5 // pred_fallthru
      _
    %p204 = scmp.lt.s32.totalorder %s13, 2
    // Predicated region
    $region25: #{vector_quantizer_forward.1} parent=5 // pred_check
      %p205 = pneg %p204
    $region26: #{vector_quantizer_forward.1} parent=5 // pred_check_branch
      %207 = sbr.rel (%p205) target = $region28
    $region27: #{vector_quantizer_forward.1} parent=5 // pred_region
      // Predicated region
      $region29: #{vector_quantizer_forward.1} parent=27 // pred_check
        %p208 = pneg %p33
      $region30: #{vector_quantizer_forward.1} parent=27 // pred_check_branch
        %210 = sbr.rel (%p208) target = $region32
      $region31: #{vector_quantizer_forward.1} parent=27 // pred_region
        %s211 = smul.u32 4, %s13
        %p212 = scmp.lt.s32.totalorder %s211, 7
        %s213 = scalar_select %p212, %s211, 7
        %s214 = smul.addr %s213, 8
        %s215 = scalar_lea.vmem %s0, %s214
        %s216 = smul.u32 4, %s13
      $region32: #{vector_quantizer_forward.1} parent=27 // pred_fallthru
        _
    $region28: #{vector_quantizer_forward.1} parent=5 // pred_fallthru
      _
    %p217 = scmp.le.s32.totalorder 1, %s13
    %p218 = scmp.lt.s32.totalorder %s13, 3
    %p219 = pnand %p217, %p218
    %p220 = pneg %p219
    // Predicated region
    $region33: #{vector_quantizer_forward.1} parent=5 // pred_check
      _
    $region34: #{vector_quantizer_forward.1} parent=5 // pred_check_branch
      %222 = sbr.rel (%p219) target = $region36
    $region35: #{vector_quantizer_forward.1} parent=5 // pred_region
      %s223 = ssub.s32 %s13, 1
      %s224 = smul.u32 4, %s18
      %p225 = scmp.lt.s32.totalorder %s224, 7
      %s226 = scalar_select %p225, %s224, 7
      %s227 = smul.addr %s226, 8
      %s228 = scalar_lea.vmem %s0, %s227
      %p229 = pneg %p39
      %p230 = pneg %p36
      %p231 = pneg %p60
      %p232 = pneg %p57
      %p233 = pneg %p81
      %p234 = pneg %p78
      %p235 = pneg %p102
      %p236 = pneg %p99
      %p237 = pneg %p128
      %p238 = pneg %p125
      %s239 = smul.u32 4, %s18
      %p240 = scmp.lt.s32.totalorder %s239, 7
      %s241 = scalar_select %p240, %s239, 7
      %s242 = smul.addr %s241, 2
      %s243 = smul.addr %s242, 4
      %s244 = scalar_lea.vmem %s4, %s243
      %p245 = pneg %p154
      %p246 = pneg %p151
      %s247 = smul.u32 4, %s18
      %p248 = scmp.lt.s32.totalorder %s247, 7
      %s249 = scalar_select %p248, %s247, 7
      %s250 = smul.addr %s249, 8
      %s251 = scalar_lea.vmem %s5, %s250
      %p252 = pneg %p180
      %p253 = pneg %p177
      %p254 = scmp.lt.s32.totalorder %s18, 1
      %s255 = scalar_select %p254, %s18, 1
      %s256 = smul.addr %s255, 2
      %s257 = scalar_lea.vmem %s6, %s256
      %s258 = smul.u32 4, %s18
      %p259 = scmp.lt.s32.totalorder %s258, 7
      %s260 = scalar_select %p259, %s258, 7
      %s261 = smul.addr %s260, 8
      %s262 = scalar_lea.vmem %s0, %s261
      %s263 = smul.u32 4, %s18
      %s264 = smul.u32 4, %s18
      %p265 = scmp.lt.s32.totalorder %s264, 7
      %s266 = scalar_select %p265, %s264, 7
      %s267 = smul.addr %s266, 2
      %s268 = smul.addr %s267, 4
      %s269 = scalar_lea.vmem %s4, %s268
      %s270 = smul.u32 4, %s18
      %s271 = smul.u32 4, %s18
      %p272 = scmp.lt.s32.totalorder %s271, 7
      %s273 = scalar_select %p272, %s271, 7
      %s274 = smul.addr %s273, 8
      %s275 = scalar_lea.vmem %s5, %s274
      %s276 = smul.u32 4, %s18
      %p277 = scmp.lt.s32.totalorder %s18, 1
      %s278 = scalar_select %p277, %s18, 1
      %s279 = smul.addr %s278, 2
      %s280 = scalar_lea.vmem %s6, %s279
      %v281 = vld [vmem:[%s262] sm:$0xff]
      %v282 = vld [vmem:[%s262 + $0x8] sm:$0xff]
      %v283 = vld [vmem:[%s262 + $0x10] sm:$0xff]
      %v284 = vld [vmem:[%s262 + $0x18] sm:$0xff]
      %v285 = vld [vmem:[%s1] sm:$0xff]
      %v286 = vld [vmem:[%s1 + $0x8] sm:$0xff]
      %v287 = vld [vmem:[%s1 + $0x10] sm:$0xff]
      %v288 = vld [vmem:[%s1 + $0x18] sm:$0xff]
      %v289 = vld [vmem:[%s1 + $0x20] sm:$0xff]
      %v290 = vld [vmem:[%s1 + $0x28] sm:$0xff]
      %v291 = vld [vmem:[%s1 + $0x30] sm:$0xff]
      %v292 = vld [vmem:[%s1 + $0x38] sm:$0xff]
      %v293 = vld [vmem:[%s1 + $0x40] sm:$0xff]
      %v294 = vld [vmem:[%s1 + $0x48] sm:$0xff]
      %v295 = vld [vmem:[%s1 + $0x50] sm:$0xff]
      %v296 = vld [vmem:[%s1 + $0x58] sm:$0xff]
      %v297 = vld [vmem:[%s1 + $0x60] sm:$0xff]
      %v298 = vld [vmem:[%s1 + $0x68] sm:$0xff]
      %v299 = vld [vmem:[%s1 + $0x70] sm:$0xff]
      %v300 = vld [vmem:[%s1 + $0x78] sm:$0xff]
      %v301 = vld [vmem:[%s1 + $0x80] sm:$0xff]
      %v302 = vld [vmem:[%s1 + $0x88] sm:$0xff]
      %v303 = vld [vmem:[%s1 + $0x90] sm:$0xff]
      %v304 = vld [vmem:[%s1 + $0x98] sm:$0xff]
      %v305 = vld [vmem:[%s1 + $0xa0] sm:$0xff]
      %v306 = vld [vmem:[%s1 + $0xa8] sm:$0xff]
      %v307 = vld [vmem:[%s1 + $0xb0] sm:$0xff]
      %v308 = vld [vmem:[%s1 + $0xb8] sm:$0xff]
      %v309 = vld [vmem:[%s1 + $0xc0] sm:$0xff]
      %v310 = vld [vmem:[%s1 + $0xc8] sm:$0xff]
      %v311 = vld [vmem:[%s1 + $0xd0] sm:$0xff]
      %v312 = vld [vmem:[%s1 + $0xd8] sm:$0xff]
      %v313 = vld [vmem:[%s1 + $0xe0] sm:$0xff]
      %v314 = vld [vmem:[%s1 + $0xe8] sm:$0xff]
      %v315 = vld [vmem:[%s1 + $0xf0] sm:$0xff]
      %v316 = vld [vmem:[%s1 + $0xf8] sm:$0xff]
      %317 = vmatpush.msra.mxu0 %v315
      %318 = vmatpush.msra.mxu0 %v313
      %319 = vmatpush.msra.mxu0 %v311
      %320 = vmatpush.msra.mxu0 %v309
      %321 = vmatpush.msra.mxu0 %v307
      %322 = vmatpush.msra.mxu0 %v305
      %323 = vmatpush.msra.mxu0 %v303
      %324 = vmatpush.msra.mxu0 %v301
      %325 = vmatpush.msra.mxu0 %v299
      %326 = vmatpush.msra.mxu0 %v297
      %327 = vmatpush.msra.mxu0 %v295
      %328 = vmatpush.msra.mxu0 %v293
      %329 = vmatpush.msra.mxu0 %v291
      %330 = vmatpush.msra.mxu0 %v289
      %331 = vmatpush.msra.mxu0 %v287
      %332 = vmatpush.msra.mxu0 %v285
      %333 = vmatmul.f32.gmra.mxu0 %v281
      %v334 = vpop.f32.mrf.mxu0
      %v335 = vadd.f32 0.0, %v334
      %336 = vmatmul.f32.gmra.mxu0 %v282
      %v337 = vpop.f32.mrf.mxu0
      %v338 = vadd.f32 0.0, %v337
      %339 = vmatmul.f32.gmra.mxu0 %v283
      %v340 = vpop.f32.mrf.mxu0
      %v341 = vadd.f32 0.0, %v340
      %342 = vmatmul.f32.gmra.mxu0 %v284
      %v343 = vpop.f32.mrf.mxu0
      %v344 = vadd.f32 0.0, %v343
      %345 = vdwg.mxu0
      %346 = vmatpush.msra.mxu0 %v316
      %347 = vmatpush.msra.mxu0 %v314
      %348 = vmatpush.msra.mxu0 %v312
      %349 = vmatpush.msra.mxu0 %v310
      %350 = vmatpush.msra.mxu0 %v308
      %351 = vmatpush.msra.mxu0 %v306
      %352 = vmatpush.msra.mxu0 %v304
      %353 = vmatpush.msra.mxu0 %v302
      %354 = vmatpush.msra.mxu0 %v300
      %355 = vmatpush.msra.mxu0 %v298
      %356 = vmatpush.msra.mxu0 %v296
      %357 = vmatpush.msra.mxu0 %v294
      %358 = vmatpush.msra.mxu0 %v292
      %359 = vmatpush.msra.mxu0 %v290
      %360 = vmatpush.msra.mxu0 %v288
      %361 = vmatpush.msra.mxu0 %v286
      %362 = vmatmul.f32.gmra.mxu0 %v281
      %v363 = vpop.f32.mrf.mxu0
      %v364 = vadd.f32 0.0, %v363
      %365 = vmatmul.f32.gmra.mxu0 %v282
      %v366 = vpop.f32.mrf.mxu0
      %v367 = vadd.f32 0.0, %v366
      %368 = vmatmul.f32.gmra.mxu0 %v283
      %v369 = vpop.f32.mrf.mxu0
      %v370 = vadd.f32 0.0, %v369
      %371 = vmatmul.f32.gmra.mxu0 %v284
      %v372 = vpop.f32.mrf.mxu0
      %v373 = vadd.f32 0.0, %v372
      %374 = vdwg.mxu0
      %v375 = vld [vmem:[%s3] sm:$0x3]
      %v377 = vperm.slane %v375, 0
      %v378 = vperm.slane %v375, 1
      %v381 = vsub.f32 %v377, %v335
      %v382 = vsub.f32 %v378, %v364
      %v383 = vsub.f32 %v377, %v338
      %v384 = vsub.f32 %v378, %v367
      %v385 = vsub.f32 %v377, %v341
      %v386 = vsub.f32 %v378, %v370
      %v387 = vsub.f32 %v377, %v344
      %v388 = vsub.f32 %v378, %v373
      %v389 = vlaneseq
      %v390 = vand.u32 %v389, 127
      %391 = vmin.xlane.f32.xlu0 %v381
      %v392 = vpop.xlane.xlu0 %391
      %393 = vmin.xlane.f32.xlu0 %v383
      %v394 = vpop.xlane.xlu0 %393
      %395 = vmin.xlane.f32.xlu0 %v385
      %v396 = vpop.xlane.xlu0 %395
      %397 = vmin.xlane.f32.xlu0 %v387
      %v398 = vpop.xlane.xlu0 %397
      %vm399 = vcmp.eq.f32.partialorder %v381, %v392
      %vm400 = vcmp.eq.f32.partialorder %v383, %v394
      %vm401 = vcmp.eq.f32.partialorder %v385, %v396
      %vm402 = vcmp.eq.f32.partialorder %v387, %v398
      %v403 = vsel %vm399, %v390, 128
      %v404 = vsel %vm400, %v390, 128
      %v405 = vsel %vm401, %v390, 128
      %v406 = vsel %vm402, %v390, 128
      %v407 = vand.u32 %v403, 65535
      %v408 = vshra.s32 %v403, 16
      %v409 = vcvt.s32.f32 %v407
      %v410 = vcvt.s32.f32 %v408
      %411 = vmin.xlane.f32.xlu0 %v410
      %v412 = vpop.xlane.xlu0 %411
      %vm413 = vcmp.eq.f32.partialorder %v410, %v412
      %v414 = vsel %vm413, %v409, inf
      %415 = vmin.xlane.f32.xlu0 %v414
      %v416 = vpop.xlane.xlu0 %415
      %v417 = vcvt.f32.s32 %v416
      %v418 = vcvt.f32.s32 %v412
      %v419 = vshll.u32 %v418, 16
      %v420 = vadd.s32 %v419, %v417
      %v421 = vand.u32 %v404, 65535
      %v422 = vshra.s32 %v404, 16
      %v423 = vcvt.s32.f32 %v421
      %v424 = vcvt.s32.f32 %v422
      %425 = vmin.xlane.f32.xlu0 %v424
      %v426 = vpop.xlane.xlu0 %425
      %vm427 = vcmp.eq.f32.partialorder %v424, %v426
      %v428 = vsel %vm427, %v423, inf
      %429 = vmin.xlane.f32.xlu0 %v428
      %v430 = vpop.xlane.xlu0 %429
      %v431 = vcvt.f32.s32 %v430
      %v432 = vcvt.f32.s32 %v426
      %v433 = vshll.u32 %v432, 16
      %v434 = vadd.s32 %v433, %v431
      %v435 = vand.u32 %v405, 65535
      %v436 = vshra.s32 %v405, 16
      %v437 = vcvt.s32.f32 %v435
      %v438 = vcvt.s32.f32 %v436
      %439 = vmin.xlane.f32.xlu0 %v438
      %v440 = vpop.xlane.xlu0 %439
      %vm441 = vcmp.eq.f32.partialorder %v438, %v440
      %v442 = vsel %vm441, %v437, inf
      %443 = vmin.xlane.f32.xlu0 %v442
      %v444 = vpop.xlane.xlu0 %443
      %v445 = vcvt.f32.s32 %v444
      %v446 = vcvt.f32.s32 %v440
      %v447 = vshll.u32 %v446, 16
      %v448 = vadd.s32 %v447, %v445
      %v449 = vand.u32 %v406, 65535
      %v450 = vshra.s32 %v406, 16
      %v451 = vcvt.s32.f32 %v449
      %v452 = vcvt.s32.f32 %v450
      %453 = vmin.xlane.f32.xlu0 %v452
      %v454 = vpop.xlane.xlu0 %453
      %vm455 = vcmp.eq.f32.partialorder %v452, %v454
      %v456 = vsel %vm455, %v451, inf
      %457 = vmin.xlane.f32.xlu0 %v456
      %v458 = vpop.xlane.xlu0 %457
      %v459 = vcvt.f32.s32 %v458
      %v460 = vcvt.f32.s32 %v454
      %v461 = vshll.u32 %v460, 16
      %v462 = vadd.s32 %v461, %v459
      %463 = vmin.xlane.f32.xlu0 %v382
      %v464 = vpop.xlane.xlu0 %463
      %465 = vmin.xlane.f32.xlu0 %v384
      %v466 = vpop.xlane.xlu0 %465
      %467 = vmin.xlane.f32.xlu0 %v386
      %v468 = vpop.xlane.xlu0 %467
      %469 = vmin.xlane.f32.xlu0 %v388
      %v470 = vpop.xlane.xlu0 %469
      %vm471 = vcmp.eq.f32.partialorder %v382, %v464
      %vm472 = vcmp.eq.f32.partialorder %v384, %v466
      %vm473 = vcmp.eq.f32.partialorder %v386, %v468
      %vm474 = vcmp.eq.f32.partialorder %v388, %v470
      %v475 = vsel %vm471, %v390, 128
      %v476 = vsel %vm472, %v390, 128
      %v477 = vsel %vm473, %v390, 128
      %v478 = vsel %vm474, %v390, 128
      %v479 = vand.u32 %v475, 65535
      %v480 = vshra.s32 %v475, 16
      %v481 = vcvt.s32.f32 %v479
      %v482 = vcvt.s32.f32 %v480
      %483 = vmin.xlane.f32.xlu0 %v482
      %v484 = vpop.xlane.xlu0 %483
      %vm485 = vcmp.eq.f32.partialorder %v482, %v484
      %v486 = vsel %vm485, %v481, inf
      %487 = vmin.xlane.f32.xlu0 %v486
      %v488 = vpop.xlane.xlu0 %487
      %v489 = vcvt.f32.s32 %v488
      %v490 = vcvt.f32.s32 %v484
      %v491 = vshll.u32 %v490, 16
      %v492 = vadd.s32 %v491, %v489
      %v493 = vand.u32 %v476, 65535
      %v494 = vshra.s32 %v476, 16
      %v495 = vcvt.s32.f32 %v493
      %v496 = vcvt.s32.f32 %v494
      %497 = vmin.xlane.f32.xlu0 %v496
      %v498 = vpop.xlane.xlu0 %497
      %vm499 = vcmp.eq.f32.partialorder %v496, %v498
      %v500 = vsel %vm499, %v495, inf
      %501 = vmin.xlane.f32.xlu0 %v500
      %v502 = vpop.xlane.xlu0 %501
      %v503 = vcvt.f32.s32 %v502
      %v504 = vcvt.f32.s32 %v498
      %v505 = vshll.u32 %v504, 16
      %v506 = vadd.s32 %v505, %v503
      %v507 = vand.u32 %v477, 65535
      %v508 = vshra.s32 %v477, 16
      %v509 = vcvt.s32.f32 %v507
      %v510 = vcvt.s32.f32 %v508
      %511 = vmin.xlane.f32.xlu0 %v510
      %v512 = vpop.xlane.xlu0 %511
      %vm513 = vcmp.eq.f32.partialorder %v510, %v512
      %v514 = vsel %vm513, %v509, inf
      %515 = vmin.xlane.f32.xlu0 %v514
      %v516 = vpop.xlane.xlu0 %515
      %v517 = vcvt.f32.s32 %v516
      %v518 = vcvt.f32.s32 %v512
      %v519 = vshll.u32 %v518, 16
      %v520 = vadd.s32 %v519, %v517
      %v521 = vand.u32 %v478, 65535
      %v522 = vshra.s32 %v478, 16
      %v523 = vcvt.s32.f32 %v521
      %v524 = vcvt.s32.f32 %v522
      %525 = vmin.xlane.f32.xlu0 %v524
      %v526 = vpop.xlane.xlu0 %525
      %vm527 = vcmp.eq.f32.partialorder %v524, %v526
      %v528 = vsel %vm527, %v523, inf
      %529 = vmin.xlane.f32.xlu0 %v528
      %v530 = vpop.xlane.xlu0 %529
      %v531 = vcvt.f32.s32 %v530
      %v532 = vcvt.f32.s32 %v526
      %v533 = vshll.u32 %v532, 16
      %v534 = vadd.s32 %v533, %v531
      %vm535 = vcmp.eq.s32.totalorder %v390, %v420
      %vm536 = vcmp.eq.s32.totalorder %v390, %v434
      %vm537 = vcmp.eq.s32.totalorder %v390, %v448
      %vm538 = vcmp.eq.s32.totalorder %v390, %v462
      %v539 = vsel %vm535, 1, 0
      %v540 = vsel %vm536, 1, 0
      %v541 = vsel %vm537, 1, 0
      %v542 = vsel %vm538, 1, 0
      %v543 = vcvt.s32.f32 %v539
      %v544 = vcvt.s32.f32 %v540
      %v545 = vcvt.s32.f32 %v541
      %v546 = vcvt.s32.f32 %v542
      %vm547 = vcmp.eq.s32.totalorder %v390, %v492
      %vm548 = vcmp.eq.s32.totalorder %v390, %v506
      %vm549 = vcmp.eq.s32.totalorder %v390, %v520
      %vm550 = vcmp.eq.s32.totalorder %v390, %v534
      %v551 = vsel %vm547, 1, 0
      %v552 = vsel %vm548, 1, 0
      %v553 = vsel %vm549, 1, 0
      %v554 = vsel %vm550, 1, 0
      %v555 = vcvt.s32.f32 %v551
      %v556 = vcvt.s32.f32 %v552
      %v557 = vcvt.s32.f32 %v553
      %v558 = vcvt.s32.f32 %v554
      %v559 = vld [vmem:[%s2] sm:$0xff]
      %v560 = vld [vmem:[%s2 + $0x8] sm:$0xff]
      %v561 = vld [vmem:[%s2 + $0x10] sm:$0xff]
      %v562 = vld [vmem:[%s2 + $0x18] sm:$0xff]
      %v563 = vld [vmem:[%s2 + $0x20] sm:$0xff]
      %v564 = vld [vmem:[%s2 + $0x28] sm:$0xff]
      %v565 = vld [vmem:[%s2 + $0x30] sm:$0xff]
      %v566 = vld [vmem:[%s2 + $0x38] sm:$0xff]
      %v567 = vld [vmem:[%s2 + $0x40] sm:$0xff]
      %v568 = vld [vmem:[%s2 + $0x48] sm:$0xff]
      %v569 = vld [vmem:[%s2 + $0x50] sm:$0xff]
      %v570 = vld [vmem:[%s2 + $0x58] sm:$0xff]
      %v571 = vld [vmem:[%s2 + $0x60] sm:$0xff]
      %v572 = vld [vmem:[%s2 + $0x68] sm:$0xff]
      %v573 = vld [vmem:[%s2 + $0x70] sm:$0xff]
      %v574 = vld [vmem:[%s2 + $0x78] sm:$0xff]
      %v575 = vld [vmem:[%s2 + $0x80] sm:$0xff]
      %v576 = vld [vmem:[%s2 + $0x88] sm:$0xff]
      %v577 = vld [vmem:[%s2 + $0x90] sm:$0xff]
      %v578 = vld [vmem:[%s2 + $0x98] sm:$0xff]
      %v579 = vld [vmem:[%s2 + $0xa0] sm:$0xff]
      %v580 = vld [vmem:[%s2 + $0xa8] sm:$0xff]
      %v581 = vld [vmem:[%s2 + $0xb0] sm:$0xff]
      %v582 = vld [vmem:[%s2 + $0xb8] sm:$0xff]
      %v583 = vld [vmem:[%s2 + $0xc0] sm:$0xff]
      %v584 = vld [vmem:[%s2 + $0xc8] sm:$0xff]
      %v585 = vld [vmem:[%s2 + $0xd0] sm:$0xff]
      %v586 = vld [vmem:[%s2 + $0xd8] sm:$0xff]
      %v587 = vld [vmem:[%s2 + $0xe0] sm:$0xff]
      %v588 = vld [vmem:[%s2 + $0xe8] sm:$0xff]
      %v589 = vld [vmem:[%s2 + $0xf0] sm:$0xff]
      %v590 = vld [vmem:[%s2 + $0xf8] sm:$0xff]
      %591 = vmatpush.msra.mxu0 %v574
      %592 = vmatpush.msra.mxu0 %v573
      %593 = vmatpush.msra.mxu0 %v572
      %594 = vmatpush.msra.mxu0 %v571
      %595 = vmatpush.msra.mxu0 %v570
      %596 = vmatpush.msra.mxu0 %v569
      %597 = vmatpush.msra.mxu0 %v568
      %598 = vmatpush.msra.mxu0 %v567
      %599 = vmatpush.msra.mxu0 %v566
      %600 = vmatpush.msra.mxu0 %v565
      %601 = vmatpush.msra.mxu0 %v564
      %602 = vmatpush.msra.mxu0 %v563
      %603 = vmatpush.msra.mxu0 %v562
      %604 = vmatpush.msra.mxu0 %v561
      %605 = vmatpush.msra.mxu0 %v560
      %606 = vmatpush.msra.mxu0 %v559
      %607 = vmatmul.f32.gmra.mxu0 %v543
      %v608 = vpop.f32.mrf.mxu0
      %v609 = vadd.f32 0.0, %v608
      %610 = vmatmul.f32.gmra.mxu0 %v544
      %v611 = vpop.f32.mrf.mxu0
      %v612 = vadd.f32 0.0, %v611
      %613 = vmatmul.f32.gmra.mxu0 %v545
      %v614 = vpop.f32.mrf.mxu0
      %v615 = vadd.f32 0.0, %v614
      %616 = vmatmul.f32.gmra.mxu0 %v546
      %v617 = vpop.f32.mrf.mxu0
      %v618 = vadd.f32 0.0, %v617
      %619 = vdwg.mxu0
      %620 = vmatpush.msra.mxu0 %v590
      %621 = vmatpush.msra.mxu0 %v589
      %622 = vmatpush.msra.mxu0 %v588
      %623 = vmatpush.msra.mxu0 %v587
      %624 = vmatpush.msra.mxu0 %v586
      %625 = vmatpush.msra.mxu0 %v585
      %626 = vmatpush.msra.mxu0 %v584
      %627 = vmatpush.msra.mxu0 %v583
      %628 = vmatpush.msra.mxu0 %v582
      %629 = vmatpush.msra.mxu0 %v581
      %630 = vmatpush.msra.mxu0 %v580
      %631 = vmatpush.msra.mxu0 %v579
      %632 = vmatpush.msra.mxu0 %v578
      %633 = vmatpush.msra.mxu0 %v577
      %634 = vmatpush.msra.mxu0 %v576
      %635 = vmatpush.msra.mxu0 %v575
      %636 = vmatmul.f32.gmra.mxu0 %v555
      %v637 = vpop.f32.mrf.mxu0
      %v638 = vadd.f32 %v609, %v637
      %639 = vmatmul.f32.gmra.mxu0 %v556
      %v640 = vpop.f32.mrf.mxu0
      %v641 = vadd.f32 %v612, %v640
      %642 = vmatmul.f32.gmra.mxu0 %v557
      %v643 = vpop.f32.mrf.mxu0
      %v644 = vadd.f32 %v615, %v643
      %645 = vmatmul.f32.gmra.mxu0 %v558
      %v646 = vpop.f32.mrf.mxu0
      %v647 = vadd.f32 %v618, %v646
      %648 = vdwg.mxu0
      %v649 = vpack.c.bf16 %v555, %v543
      %v650 = vpack.c.bf16 %v556, %v544
      %v651 = vpack.c.bf16 %v557, %v545
      %v652 = vpack.c.bf16 %v558, %v546
      %653 = vst [vmem:[%s269] sm:$0xff] %v649
      %654 = vst [vmem:[%s269 + $0x8] sm:$0xff] %v650
      %655 = vst [vmem:[%s269 + $0x10] sm:$0xff] %v651
      %656 = vst [vmem:[%s269 + $0x18] sm:$0xff] %v652
      %657 = vst [vmem:[%s275] sm:$0xff] %v638
      %658 = vst [vmem:[%s275 + $0x8] sm:$0xff] %v641
      %659 = vst [vmem:[%s275 + $0x10] sm:$0xff] %v644
      %660 = vst [vmem:[%s275 + $0x18] sm:$0xff] %v647
      %v661 = vsub.f32 %v638, %v281
      %v662 = vsub.f32 %v641, %v282
      %v663 = vsub.f32 %v644, %v283
      %v664 = vsub.f32 %v647, %v284
      %v665 = vmul.f32 %v661, %v661
      %v666 = vmul.f32 %v662, %v662
      %v667 = vmul.f32 %v663, %v663
      %v668 = vmul.f32 %v664, %v664
      %v669 = vadd.f32 %v665, %v666
      %v670 = vadd.f32 %v669, %v667
      %v671 = vadd.f32 %v670, %v668
      %672 = vadd.xlane.f32.xlu0 %v671
      %v673 = vpop.xlane.xlu0 %672
      %v674 = vrot.slane %v673, 4
      %v675 = vadd.f32 %v673, %v674
      %v676 = vrot.slane %v675, 2
      %v677 = vadd.f32 %v675, %v676
      %v678 = vrot.slane %v677, 1
      %v679 = vadd.f32 %v677, %v678
      %s680 = vtos %v679
      %v681 = vadd.f32 %v543, %v555
      %v682 = vadd.f32 %v544, %v556
      %v683 = vadd.f32 %v545, %v557
      %v684 = vadd.f32 %v546, %v558
      %v685 = vadd.f32 %v681, %v682
      %v686 = vadd.f32 %v685, %v683
      %v687 = vadd.f32 %v686, %v684
      %v688 = vrot.slane %v687, 4
      %v689 = vadd.f32 %v687, %v688
      %v690 = vrot.slane %v689, 2
      %v691 = vadd.f32 %v689, %v690
      %v692 = vrot.slane %v691, 1
      %v693 = vadd.f32 %v691, %v692
      %vm694 = vcmp.eq.s32.totalorder %v390, 0
      %v695 = vstv %s680
      %v696 = vsel %vm694, %v695, 0.0
      %v699 = vrot.slane %v696, 7
      %vm700 = vcmask 1040384
      %v701 = vsel %vm700, %v693, %v699
      %v703 = vlaneseq
      %vm704 = vcmp.ge.s32.totalorder %v703, 0
      %vm705 = vcmp.lt.s32.totalorder %v703, 256
      %vm706 = vmand %vm704, %vm705
      %707 = vst.msk [vmem:[%s280] sm:$0x3] %vm706, %v701
      %s708 = smul.u32 4, %s18
      %p709 = scmp.lt.s32.totalorder %s708, 7
      %s710 = scalar_select %p709, %s708, 7
      %s711 = smul.addr %s710, 2
      %s712 = smul.addr %s711, 4
      %s713 = scalar_lea.vmem %s4, %s712
      %s714 = smul.u32 4, %s18
      %p715 = scmp.lt.s32.totalorder %s714, 7
      %s716 = scalar_select %p715, %s714, 7
      %s717 = smul.addr %s716, 8
      %s718 = scalar_lea.vmem %s5, %s717
      %p719 = scmp.lt.s32.totalorder %s18, 1
      %s720 = scalar_select %p719, %s18, 1
      %s721 = smul.addr %s720, 2
      %s722 = scalar_lea.vmem %s6, %s721
      // Predicated region
      $region37: #{vector_quantizer_forward.1} parent=35 // pred_check
        %p723 = pneg %p125
      $region38: #{vector_quantizer_forward.1} parent=35 // pred_check_branch
        %725 = sbr.rel (%p723) target = $region40
      $region39: #{vector_quantizer_forward.1} parent=35 // pred_region
        %s726 = smul.u32 4, %s18
      $region40: #{vector_quantizer_forward.1} parent=35 // pred_fallthru
        _
      // Predicated region
      $region41: #{vector_quantizer_forward.1} parent=35 // pred_check
        %p727 = pneg %p151
      $region42: #{vector_quantizer_forward.1} parent=35 // pred_check_branch
        %729 = sbr.rel (%p727) target = $region44
      $region43: #{vector_quantizer_forward.1} parent=35 // pred_region
        %s730 = smul.u32 4, %s18
      $region44: #{vector_quantizer_forward.1} parent=35 // pred_fallthru
        _
      // Predicated region
      $region45: #{vector_quantizer_forward.1} parent=35 // pred_check
        %p731 = pneg %p177
      $region46: #{vector_quantizer_forward.1} parent=35 // pred_check_branch
        %733 = sbr.rel (%p731) target = $region48
      $region47: #{vector_quantizer_forward.1} parent=35 // pred_region
        _
      $region48: #{vector_quantizer_forward.1} parent=35 // pred_fallthru
        _
    $region36: #{vector_quantizer_forward.1} parent=5 // pred_fallthru
      _
    %p734 = scmp.le.s32.totalorder 2, %s13
    // Predicated region
    $region49: #{vector_quantizer_forward.1} parent=5 // pred_check
      %p735 = pneg %p734
    $region50: #{vector_quantizer_forward.1} parent=5 // pred_check_branch
      %737 = sbr.rel (%p735) target = $region52
    $region51: #{vector_quantizer_forward.1} parent=5 // pred_region
      %s738 = ssub.s32 %s13, 2
      // Predicated region
      $region53: #{vector_quantizer_forward.1} parent=51 // pred_check
        %p739 = pneg %p131
      $region54: #{vector_quantizer_forward.1} parent=51 // pred_check_branch
        %741 = sbr.rel (%p739) target = $region56
      $region55: #{vector_quantizer_forward.1} parent=51 // pred_region
        %s742 = smul.u32 4, %s19
        %p743 = scmp.lt.s32.totalorder %s742, 7
        %s744 = scalar_select %p743, %s742, 7
        %s745 = smul.addr %s744, 2
        %s746 = smul.addr %s745, 4
        %s747 = scalar_lea.vmem %s4, %s746
      $region56: #{vector_quantizer_forward.1} parent=51 // pred_fallthru
        _
      // Predicated region
      $region57: #{vector_quantizer_forward.1} parent=51 // pred_check
        %p748 = pneg %p157
      $region58: #{vector_quantizer_forward.1} parent=51 // pred_check_branch
        %750 = sbr.rel (%p748) target = $region60
      $region59: #{vector_quantizer_forward.1} parent=51 // pred_region
        %s751 = smul.u32 4, %s19
        %p752 = scmp.lt.s32.totalorder %s751, 7
        %s753 = scalar_select %p752, %s751, 7
        %s754 = smul.addr %s753, 8
        %s755 = scalar_lea.vmem %s5, %s754
      $region60: #{vector_quantizer_forward.1} parent=51 // pred_fallthru
        _
      // Predicated region
      $region61: #{vector_quantizer_forward.1} parent=51 // pred_check
        %p756 = pneg %p183
      $region62: #{vector_quantizer_forward.1} parent=51 // pred_check_branch
        %758 = sbr.rel (%p756) target = $region64
      $region63: #{vector_quantizer_forward.1} parent=51 // pred_region
        %p759 = scmp.lt.s32.totalorder %s19, 1
        %s760 = scalar_select %p759, %s19, 1
        %s761 = smul.addr %s760, 2
        %s762 = scalar_lea.vmem %s6, %s761
      $region64: #{vector_quantizer_forward.1} parent=51 // pred_fallthru
        _
    $region52: #{vector_quantizer_forward.1} parent=5 // pred_fallthru
      _
  $region6: #{vector_quantizer_forward.1} parent=0 // loop_footer
    %s17 = sadd.s32 1, %s13
  $region7: #{vector_quantizer_forward.1} parent=0 // loop_footer_branch
    %12 = sbr.rel target = $region3
  $region8: #{vector_quantizer_forward.1} parent=0 // loop_exit
    _

</llo_original>
